<compile_context>
chip_gen: v7x
topology: tpu7x:2x2x1
jax: 0.10.0
libtpu: 0.0.40
codegen_flags: <defaults>
</compile_context>

<pallas_src>
import functools

import jax
import jax.numpy as jnp
from jax.experimental import pallas as pl
from jax.experimental.pallas import tpu as pltpu


def _round_up(a, m):
    return ((a + m - 1) // m) * m


def _temporal_block_kernel(*refs, K, dilation, padding, PE, H, TL, has_downsample):
    """One (batch, L-tile) grid step.

    Refs (in order):
      x_halo (1,H,Cin_p)  bf16  last H rows of the previous L-tile (zeroed for i==0)
      x_cur  (1,TL,Cin_p) bf16  current L-tile
      w1     (K*Cin_p,Cout_p) bf16, b1 (1,Cout_p) f32
      w2     (K*Cout_p,Cout_p) bf16, b2 (1,Cout_p) f32
      [wd    (Cin_p,Cout_p) bf16, bd (1,Cout_p) f32]   only if has_downsample
      o      (1,TL,Cout_p) f32
      xs     (H+TL,Cin_p) bf16  VMEM scratch: assembled causal window
    """
    if has_downsample:
        (xh_ref, xc_ref, w1_ref, b1_ref, w2_ref, b2_ref,
         wd_ref, bd_ref, o_ref, xs_ref) = refs
    else:
        (xh_ref, xc_ref, w1_ref, b1_ref, w2_ref, b2_ref, o_ref, xs_ref) = refs
        wd_ref = bd_ref = None

    i = pl.program_id(1)
    d = dilation
    L1 = TL + PE                    # conv1 output rows computed (incl. causal halo)

    # ---- assemble x window [i*TL - H, (i+1)*TL) into VMEM scratch (no L-concat) ----
    @pl.when(i == 0)
    def _():                        # rows before the sequence start are zeros (ZeroPad2d)
        xs_ref[0:H, :] = jnp.zeros((H, xs_ref.shape[1]), dtype=xs_ref.dtype)

    @pl.when(i > 0)
    def _():
        xs_ref[0:H, :] = xh_ref[0]

    xs_ref[H:, :] = xc_ref[0]
    xw = xs_ref[...]                                    # (H+TL, Cin_p) bf16

    # ---- conv1: K dilated taps concatenated along lanes -> one MXU matmul ----
    # All slice starts are static Python ints, so these are compile-time windows.
    off = H - PE - padding
    x_cols = jnp.concatenate(
        [xw[off + j * d: off + j * d + L1, :] for j in range(K)], axis=1)
    h = jnp.dot(x_cols, w1_ref[...], preferred_element_type=jnp.float32)
    h = jnp.maximum(h + b1_ref[...], 0.0)               # bias + relu in f32

    # conv2 sees ZeroPad2d(conv1 output): halo rows before global row 0 must be 0.
    # Cheap VPU select; only actually zeroes anything on the first L-tile.
    row = jax.lax.broadcasted_iota(jnp.int32, (L1, 1), 0)
    h = jnp.where(jnp.logical_or(i > 0, row >= PE), h, 0.0)
    hb = h.astype(jnp.bfloat16)                         # bf16 operands for the MXU

    # ---- conv2: same im2col trick, contraction K*Cout_p ----
    off2 = PE - padding
    h_cols = jnp.concatenate(
        [hb[off2 + j * d: off2 + j * d + TL, :] for j in range(K)], axis=1)
    out = jnp.dot(h_cols, w2_ref[...], preferred_element_type=jnp.float32)
    out = jnp.maximum(out + b2_ref[...], 0.0)

    # ---- residual branch: 1x1 conv downsample or identity ----
    if has_downsample:
        res = jnp.dot(xc_ref[0], wd_ref[...], preferred_element_type=jnp.float32)
        res = res + bd_ref[...]
    else:
        res = xc_ref[0].astype(jnp.float32)

    o_ref[0, :, :] = jnp.maximum(out + res, 0.0)        # lane-dense f32 store


def temporal_block(x_ncl, params, *, kernel_size, dilation, padding, tile_l=None):
    """x_ncl: (N, C_in, L) float32 in PyTorch layout. Returns (N, C_out, L) f32."""
    n, c_in, L = x_ncl.shape
    w1, b1, w2, b2, wd, bd = params
    c_out = w1.shape[2]
    K = kernel_size
    # Residual add only type-checks when causal padding preserves length
    # (same constraint as the PyTorch module).
    assert padding == dilation * (K - 1)
    has_downsample = wd is not None

    # Lane-dense channel padding (loads and the output store use full 128 lanes).
    cin_p = _round_up(c_in, 128)
    cout_p = _round_up(c_out, 128)

    # Causal halo geometry (multiples of 8/16 so bf16 sublane packing stays aligned):
    #   PE = conv1-output halo rows recomputed per tile (>= padding)
    #   H  = x halo rows fetched from the previous tile (>= PE + padding)
    PE = _round_up(padding, 8) if padding > 0 else 0
    H = max(16, _round_up(PE + padding, 16))

    # L-tile: ~512 rows keeps double-buffered blocks + f32 intermediates a few MiB,
    # safe under v7x's 64 MiB VMEM while near the HBM roofline on v5e/v6e.
    if tile_l is None:
        tile_l = min(512, _round_up(L, 16))
    TL = max(_round_up(tile_l, H), H)
    Lp = _round_up(L, TL)
    num_tiles = Lp // TL
    assert TL % H == 0

    # Channels-last, channel- and L-padded, bf16 activations.
    x_nlc = jnp.transpose(x_ncl, (0, 2, 1))
    x_pad = jnp.pad(x_nlc, ((0, 0), (0, Lp - L), (0, cin_p - c_in))).astype(jnp.bfloat16)

    # im2col weights: (K, Cin, Cout) -> (K*Cin_p, Cout_p), bf16; biases stay f32.
    w1f = jnp.pad(w1, ((0, 0), (0, cin_p - c_in), (0, cout_p - c_out))
                  ).reshape(K * cin_p, cout_p).astype(jnp.bfloat16)
    w2f = jnp.pad(w2, ((0, 0), (0, cout_p - c_out), (0, cout_p - c_out))
                  ).reshape(K * cout_p, cout_p).astype(jnp.bfloat16)
    b1p = jnp.pad(b1, ((0, 0), (0, cout_p - c_out))).astype(jnp.float32)
    b2p = jnp.pad(b2, ((0, 0), (0, cout_p - c_out))).astype(jnp.float32)

    blocks_per_tile = TL // H
    args = [x_pad, x_pad, w1f, b1p, w2f, b2p]
    in_specs = [
        # halo: last H rows of the previous L-tile (block 0 for i==0, zeroed in-kernel)
        pl.BlockSpec((1, H, cin_p),
                     lambda b, i: (b, jnp.maximum(i * blocks_per_tile - 1, 0), 0)),
        # current L-tile
        pl.BlockSpec((1, TL, cin_p), lambda b, i: (b, i, 0)),
        # weights / biases: constant index_map -> fetched once, stay resident
        pl.BlockSpec((K * cin_p, cout_p), lambda b, i: (0, 0)),
        pl.BlockSpec((1, cout_p), lambda b, i: (0, 0)),
        pl.BlockSpec((K * cout_p, cout_p), lambda b, i: (0, 0)),
        pl.BlockSpec((1, cout_p), lambda b, i: (0, 0)),
    ]
    if has_downsample:
        wdp = jnp.pad(wd, ((0, cin_p - c_in), (0, cout_p - c_out))).astype(jnp.bfloat16)
        bdp = jnp.pad(bd, ((0, 0), (0, cout_p - c_out))).astype(jnp.float32)
        args += [wdp, bdp]
        in_specs += [pl.BlockSpec((cin_p, cout_p), lambda b, i: (0, 0)),
                     pl.BlockSpec((1, cout_p), lambda b, i: (0, 0))]

    kernel = functools.partial(_temporal_block_kernel,
                               K=K, dilation=dilation, padding=padding,
                               PE=PE, H=H, TL=TL, has_downsample=has_downsample)

    # Advisory cost hint for the XLA scheduler around the custom call.
    rows = n * Lp
    flops = rows * (2 * K * cin_p * cout_p + 2 * K * cout_p * cout_p
                    + (2 * cin_p * cout_p if has_downsample else 0))
    bytes_accessed = (x_pad.size * 2                      # bf16 activations in
                      + rows * cout_p * 4                 # f32 activations out
                      + (w1f.size + w2f.size) * 2 + (b1p.size + b2p.size) * 4
                      + ((cin_p * cout_p * 2 + cout_p * 4) if has_downsample else 0))
    cost = pl.CostEstimate(flops=int(flops), transcendentals=0,
                           bytes_accessed=int(bytes_accessed))

    out_nlc = pl.pallas_call(
        kernel,
        grid=(n, num_tiles),
        in_specs=in_specs,
        out_specs=pl.BlockSpec((1, TL, cout_p), lambda b, i: (b, i, 0)),
        out_shape=jax.ShapeDtypeStruct((n, Lp, cout_p), jnp.float32),
        scratch_shapes=[pltpu.VMEM((H + TL, cin_p), jnp.bfloat16)],
        compiler_params=pltpu.CompilerParams(
            # Every (batch, L-tile) step is independent (halo comes from the
            # *input*, not a carried accumulator), so both axes can be sharded
            # across TensorCores.
            dimension_semantics=("parallel", "parallel"),
            vmem_limit_bytes=48 * 1024 * 1024),   # above 32 MiB default, < v7x 64 MiB
        cost_estimate=cost,
    )(*args)

    return jnp.transpose(out_nlc[:, :L, :c_out], (0, 2, 1))   # back to (N, C_out, L)


def init_params(key, n_inputs, n_outputs, kernel_size):
    """Deterministic synthetic parameters, with weight_norm applied to the convs."""
    k1, k2, k3, k4, k5, k6, k7, k8 = jax.random.split(key, 8)

    def wn_conv(kv, kg, kb, cin, cout):
        # weight_norm(dim=0): w = g * v / ||v||, norm over all dims except out-channels.
        v = jax.random.normal(kv, (cout, cin, 1, kernel_size), jnp.float32) * 0.1
        g = jax.random.uniform(kg, (cout, 1, 1, 1), jnp.float32, minval=0.5, maxval=1.5)
        norm = jnp.sqrt(jnp.sum(v * v, axis=(1, 2, 3), keepdims=True))
        w = g * v / norm                                  # (Cout, Cin, 1, K)
        w_kco = jnp.transpose(w[:, :, 0, :], (2, 1, 0))   # (K, Cin, Cout)
        b = jax.random.normal(kb, (1, cout), jnp.float32) * 0.1
        return w_kco, b

    w1, b1 = wn_conv(k1, k2, k3, n_inputs, n_outputs)
    w2, b2 = wn_conv(k4, k5, k6, n_outputs, n_outputs)
    if n_inputs != n_outputs:
        wd_oc1 = jax.random.normal(k7, (n_outputs, n_inputs, 1), jnp.float32) * 0.1
        wd = jnp.transpose(wd_oc1[:, :, 0], (1, 0))       # (Cin, Cout)
        bd = jax.random.normal(k8, (1, n_outputs), jnp.float32) * 0.1
    else:
        wd, bd = None, None
    return (w1, b1, w2, b2, wd, bd)


def reference(x_ncl, params, *, kernel_size, dilation, padding):
    """Pure-JAX reference mirroring the kernel's bf16 operand quantization."""
    w1, b1, w2, b2, wd, bd = params
    f32 = jnp.float32
    bf = lambda a: a.astype(jnp.bfloat16).astype(f32)
    x = bf(jnp.transpose(x_ncl, (0, 2, 1)))
    d = dilation

    def cc(inp, w, b):
        n_, L_, _ = inp.shape
        xp = jnp.pad(inp, ((0, 0), (padding, 0), (0, 0)))
        acc = jnp.zeros((n_, L_, w.shape[2]), f32)
        for j in range(kernel_size):
            acc = acc + jnp.einsum('nlc,co->nlo', xp[:, j * d: j * d + L_, :], w[j],
                                   preferred_element_type=f32)
        return acc + b.reshape(1, 1, -1)

    h = jax.nn.relu(cc(x, bf(w1), b1))
    h = bf(h)
    out = jax.nn.relu(cc(h, bf(w2), b2))
    if wd is not None:
        res = jnp.einsum('nlc,co->nlo', x, bf(wd), preferred_element_type=f32)
        res = res + bd.reshape(1, 1, -1)
    else:
        res = x
    return jnp.transpose(jax.nn.relu(out + res), (0, 2, 1))


if __name__ == "__main__":
    key = jax.random.PRNGKey(0)
    kx, kp = jax.random.split(key)

    # Small shapes consistent with the module: (batch, n_inputs, seq_len).
    # tile_l=16 forces 3 L-tiles so the causal-halo / tiled-grid path is exercised.
    N, C_IN, C_OUT, L = 2, 4, 8, 48
    K_SIZE, DILATION = 3, 2
    PADDING = (K_SIZE - 1) * DILATION                  # causal, length-preserving

    x = jax.random.normal(kx, (N, C_IN, L), jnp.float32)
    params = init_params(kp, C_IN, C_OUT, K_SIZE)

    out = temporal_block(x, params, kernel_size=K_SIZE, dilation=DILATION,
                         padding=PADDING, tile_l=16)
    out = jax.block_until_ready(out)

    ref = reference(x, params, kernel_size=K_SIZE, dilation=DILATION,
                    padding=PADDING)
    assert out.shape == (N, C_OUT, L), out.shape
    err = float(jnp.max(jnp.abs(out - ref)))
    assert bool(jnp.allclose(out, ref, atol=5e-4, rtol=5e-4)), err
    print("KERNEL_OK")
</pallas_src>

<mosaic_0001>
module attributes {stable_mosaic.version = 11 : i64} {
  func.func @_temporal_block_kernel(%arg0: i32, %arg1: i32, %arg2: memref<1x16x128xbf16, #tpu.memory_space<vmem>>, %arg3: memref<1x16x128xbf16, #tpu.memory_space<vmem>>, %arg4: memref<384x128xbf16, #tpu.memory_space<vmem>>, %arg5: memref<1x128xf32, #tpu.memory_space<vmem>>, %arg6: memref<384x128xbf16, #tpu.memory_space<vmem>>, %arg7: memref<1x128xf32, #tpu.memory_space<vmem>>, %arg8: memref<128x128xbf16, #tpu.memory_space<vmem>>, %arg9: memref<1x128xf32, #tpu.memory_space<vmem>>, %arg10: memref<1x16x128xf32, #tpu.memory_space<vmem>>, %arg11: memref<32x128xbf16, #tpu.memory_space<vmem>>) attributes {dimension_semantics = [#tpu.dimension_semantics<parallel>, #tpu.dimension_semantics<parallel>], iteration_bounds = array<i64: 2, 3>, scalar_prefetch = 0 : i64, scratch_operands = 1 : i64, tpu.core_type = #tpu.core_type<tc>, window_params = [{transform_indices = @transform_0, window_bounds = array<i64: 1, 16, 128>}, {transform_indices = @transform_1, window_bounds = array<i64: 1, 16, 128>}, {pipeline_mode = #tpu.pipeline_mode<synchronous>, transform_indices = @transform_2, window_bounds = array<i64: 384, 128>}, {pipeline_mode = #tpu.pipeline_mode<synchronous>, transform_indices = @transform_3, window_bounds = array<i64: 1, 128>}, {pipeline_mode = #tpu.pipeline_mode<synchronous>, transform_indices = @transform_4, window_bounds = array<i64: 384, 128>}, {pipeline_mode = #tpu.pipeline_mode<synchronous>, transform_indices = @transform_5, window_bounds = array<i64: 1, 128>}, {pipeline_mode = #tpu.pipeline_mode<synchronous>, transform_indices = @transform_6, window_bounds = array<i64: 128, 128>}, {pipeline_mode = #tpu.pipeline_mode<synchronous>, transform_indices = @transform_7, window_bounds = array<i64: 1, 128>}, {transform_indices = @transform_8, window_bounds = array<i64: 1, 16, 128>}]} {
    %c0_i32 = arith.constant 0 : i32
    %0 = arith.cmpi eq, %arg1, %c0_i32 : i32
    %1 = arith.extui %0 : i1 to i32
    %c0_i32_0 = arith.constant 0 : i32
    %2 = arith.cmpi ne, %1, %c0_i32_0 : i32
    scf.if %2 {
      %cst_33 = arith.constant 0.000000e+00 : bf16
      %56 = vector.broadcast %cst_33 : bf16 to vector<16x128xbf16>
      %c0_34 = arith.constant 0 : index
      %c0_35 = arith.constant 0 : index
      %57 = vector.load %arg11[%c0_34, %c0_35] : memref<32x128xbf16, #tpu.memory_space<vmem>>, vector<16x128xbf16>
      tpu.vector_store %arg11[%c0_34, %c0_35], %56 {strides = array<i32>} : memref<32x128xbf16, #tpu.memory_space<vmem>>, vector<16x128xbf16>,
    } else {
    }
    %c0_i32_1 = arith.constant 0 : i32
    %3 = arith.cmpi sgt, %arg1, %c0_i32_1 : i32
    %4 = arith.extui %3 : i1 to i32
    %c0_i32_2 = arith.constant 0 : i32
    %5 = arith.cmpi ne, %4, %c0_i32_2 : i32
    scf.if %5 {
      %c0_33 = arith.constant 0 : index
      %c0_34 = arith.constant 0 : index
      %c0_35 = arith.constant 0 : index
      %56 = vector.load %arg2[%c0_33, %c0_34, %c0_35] : memref<1x16x128xbf16, #tpu.memory_space<vmem>>, vector<1x16x128xbf16>
      %57 = vector.shape_cast %56 : vector<1x16x128xbf16> to vector<16x128xbf16>
      %c0_36 = arith.constant 0 : index
      %c0_37 = arith.constant 0 : index
      %58 = vector.load %arg11[%c0_36, %c0_37] : memref<32x128xbf16, #tpu.memory_space<vmem>>, vector<16x128xbf16>
      tpu.vector_store %arg11[%c0_36, %c0_37], %57 {strides = array<i32>} : memref<32x128xbf16, #tpu.memory_space<vmem>>, vector<16x128xbf16>,
    } else {
    }
    %c0 = arith.constant 0 : index
    %c0_3 = arith.constant 0 : index
    %c0_4 = arith.constant 0 : index
    %6 = vector.load %arg3[%c0, %c0_3, %c0_4] : memref<1x16x128xbf16, #tpu.memory_space<vmem>>, vector<1x16x128xbf16>
    %7 = vector.shape_cast %6 : vector<1x16x128xbf16> to vector<16x128xbf16>
    %c16 = arith.constant 16 : index
    %c0_5 = arith.constant 0 : index
    %8 = vector.load %arg11[%c16, %c0_5] : memref<32x128xbf16, #tpu.memory_space<vmem>>, vector<16x128xbf16>
    tpu.vector_store %arg11[%c16, %c0_5], %7 {strides = array<i32>} : memref<32x128xbf16, #tpu.memory_space<vmem>>, vector<16x128xbf16>,
    %c0_6 = arith.constant 0 : index
    %c0_7 = arith.constant 0 : index
    %9 = vector.load %arg11[%c0_6, %c0_7] : memref<32x128xbf16, #tpu.memory_space<vmem>>, vector<32x128xbf16>
    %10 = vector.extract_strided_slice %9 {offsets = [4, 0], sizes = [24, 128], strides = [1, 1]} : vector<32x128xbf16> to vector<24x128xbf16>
    %11 = vector.extract_strided_slice %9 {offsets = [6, 0], sizes = [24, 128], strides = [1, 1]} : vector<32x128xbf16> to vector<24x128xbf16>
    %12 = vector.extract_strided_slice %9 {offsets = [8, 0], sizes = [24, 128], strides = [1, 1]} : vector<32x128xbf16> to vector<24x128xbf16>
    %13 = tpu.concatenate %10, %11, %12 in 1 : vector<24x128xbf16>, vector<24x128xbf16>, vector<24x128xbf16> -> vector<24x384xbf16>
    %c0_8 = arith.constant 0 : index
    %c0_9 = arith.constant 0 : index
    %14 = vector.load %arg4[%c0_8, %c0_9] : memref<384x128xbf16, #tpu.memory_space<vmem>>, vector<384x128xbf16>
    %cst = arith.constant dense<0.000000e+00> : vector<24x128xf32>
    %15 = tpu.matmul %13, %14, %cst {dimension_numbers = #tpu.dot_dimension_numbers<[1], [0], [0], [1], [0, 0, 1, 1], [], []>} : vector<24x384xbf16>, vector<384x128xbf16>, vector<24x128xf32> -> vector<24x128xf32>
    %c0_10 = arith.constant 0 : index
    %c0_11 = arith.constant 0 : index
    %16 = vector.load %arg5[%c0_10, %c0_11] : memref<1x128xf32, #tpu.memory_space<vmem>>, vector<1x128xf32>
    %17 = vector.broadcast %16 : vector<1x128xf32> to vector<24x128xf32>
    %18 = arith.addf %15, %17 : vector<24x128xf32>
    %cst_12 = arith.constant 0.000000e+00 : f32
    %19 = vector.broadcast %cst_12 : f32 to vector<24x128xf32>
    %20 = arith.maximumf %18, %19 : vector<24x128xf32>
    %21 = tpu.iota {dimensions = array<i32: 0>} : vector<24x1xi32>
    %c0_i32_13 = arith.constant 0 : i32
    %22 = arith.cmpi sgt, %arg1, %c0_i32_13 : i32
    %c8_i32 = arith.constant 8 : i32
    %23 = vector.broadcast %c8_i32 : i32 to vector<24x1xi32>
    %24 = arith.cmpi sge, %21, %23 : vector<24x1xi32>
    %25 = vector.broadcast %22 : i1 to vector<24x1xi1>
    %26 = arith.ori %25, %24 : vector<24x1xi1>
    %cst_14 = arith.constant 0.000000e+00 : f32
    %27 = vector.shape_cast %26 : vector<24x1xi1> to vector<24x1xi1>
    %28 = vector.broadcast %27 : vector<24x1xi1> to vector<24x128xi1>
    %29 = vector.broadcast %cst_14 : f32 to vector<24x128xf32>
    %30 = arith.select %28, %20, %29 : vector<24x128xi1>, vector<24x128xf32>
    %31 = arith.truncf %30 : vector<24x128xf32> to vector<24x128xbf16>
    %32 = vector.extract_strided_slice %31 {offsets = [4, 0], sizes = [16, 128], strides = [1, 1]} : vector<24x128xbf16> to vector<16x128xbf16>
    %33 = vector.extract_strided_slice %31 {offsets = [6, 0], sizes = [16, 128], strides = [1, 1]} : vector<24x128xbf16> to vector<16x128xbf16>
    %34 = vector.extract_strided_slice %31 {offsets = [8, 0], sizes = [16, 128], strides = [1, 1]} : vector<24x128xbf16> to vector<16x128xbf16>
    %35 = tpu.concatenate %32, %33, %34 in 1 : vector<16x128xbf16>, vector<16x128xbf16>, vector<16x128xbf16> -> vector<16x384xbf16>
    %c0_15 = arith.constant 0 : index
    %c0_16 = arith.constant 0 : index
    %36 = vector.load %arg6[%c0_15, %c0_16] : memref<384x128xbf16, #tpu.memory_space<vmem>>, vector<384x128xbf16>
    %cst_17 = arith.constant dense<0.000000e+00> : vector<16x128xf32>
    %37 = tpu.matmul %35, %36, %cst_17 {dimension_numbers = #tpu.dot_dimension_numbers<[1], [0], [0], [1], [0, 0, 1, 1], [], []>} : vector<16x384xbf16>, vector<384x128xbf16>, vector<16x128xf32> -> vector<16x128xf32>
    %c0_18 = arith.constant 0 : index
    %c0_19 = arith.constant 0 : index
    %38 = vector.load %arg7[%c0_18, %c0_19] : memref<1x128xf32, #tpu.memory_space<vmem>>, vector<1x128xf32>
    %39 = vector.broadcast %38 : vector<1x128xf32> to vector<16x128xf32>
    %40 = arith.addf %37, %39 : vector<16x128xf32>
    %cst_20 = arith.constant 0.000000e+00 : f32
    %41 = vector.broadcast %cst_20 : f32 to vector<16x128xf32>
    %42 = arith.maximumf %40, %41 : vector<16x128xf32>
    %c0_21 = arith.constant 0 : index
    %c0_22 = arith.constant 0 : index
    %c0_23 = arith.constant 0 : index
    %43 = vector.load %arg3[%c0_21, %c0_22, %c0_23] : memref<1x16x128xbf16, #tpu.memory_space<vmem>>, vector<1x16x128xbf16>
    %44 = vector.shape_cast %43 : vector<1x16x128xbf16> to vector<16x128xbf16>
    %c0_24 = arith.constant 0 : index
    %c0_25 = arith.constant 0 : index
    %45 = vector.load %arg8[%c0_24, %c0_25] : memref<128x128xbf16, #tpu.memory_space<vmem>>, vector<128x128xbf16>
    %cst_26 = arith.constant dense<0.000000e+00> : vector<16x128xf32>
    %46 = tpu.matmul %44, %45, %cst_26 {dimension_numbers = #tpu.dot_dimension_numbers<[1], [0], [0], [1], [0, 0, 1, 1], [], []>} : vector<16x128xbf16>, vector<128x128xbf16>, vector<16x128xf32> -> vector<16x128xf32>
    %c0_27 = arith.constant 0 : index
    %c0_28 = arith.constant 0 : index
    %47 = vector.load %arg9[%c0_27, %c0_28] : memref<1x128xf32, #tpu.memory_space<vmem>>, vector<1x128xf32>
    %48 = vector.broadcast %47 : vector<1x128xf32> to vector<16x128xf32>
    %49 = arith.addf %46, %48 : vector<16x128xf32>
    %50 = arith.addf %42, %49 : vector<16x128xf32>
    %cst_29 = arith.constant 0.000000e+00 : f32
    %51 = vector.broadcast %cst_29 : f32 to vector<16x128xf32>
    %52 = arith.maximumf %50, %51 : vector<16x128xf32>
    %c0_30 = arith.constant 0 : index
    %c0_31 = arith.constant 0 : index
    %c0_32 = arith.constant 0 : index
    %53 = vector.load %arg10[%c0_30, %c0_31, %c0_32] : memref<1x16x128xf32, #tpu.memory_space<vmem>>, vector<1x16x128xf32>
    %54 = vector.shape_cast %53 : vector<1x16x128xf32> to vector<16x128xf32>
    %55 = vector.shape_cast %52 : vector<16x128xf32> to vector<1x16x128xf32>
    tpu.vector_store %arg10[%c0_30, %c0_31, %c0_32], %55 {strides = array<i32>} : memref<1x16x128xf32, #tpu.memory_space<vmem>>, vector<1x16x128xf32>,
    return
  }
  func.func @transform_0(%arg0: i32, %arg1: i32) -> (i32, i32, i32) {
    %c1_i32 = arith.constant 1 : i32
    %0 = arith.muli %arg1, %c1_i32 : i32
    %c1_i32_0 = arith.constant 1 : i32
    %1 = arith.subi %0, %c1_i32_0 : i32
    %c0_i32 = arith.constant 0 : i32
    %2 = arith.maxsi %1, %c0_i32 : i32
    %c0_i32_1 = arith.constant 0 : i32
    %c0_i32_2 = arith.constant 0 : i32
    return %arg0, %2, %c0_i32_1 : i32, i32, i32
  }
  func.func @transform_1(%arg0: i32, %arg1: i32) -> (i32, i32, i32) {
    %c0_i32 = arith.constant 0 : i32
    %c0_i32_0 = arith.constant 0 : i32
    return %arg0, %arg1, %c0_i32 : i32, i32, i32
  }
  func.func @transform_2(%arg0: i32, %arg1: i32) -> (i32, i32) {
    %c0_i32 = arith.constant 0 : i32
    %c0_i32_0 = arith.constant 0 : i32
    %c0_i32_1 = arith.constant 0 : i32
    return %c0_i32, %c0_i32_0 : i32, i32
  }
  func.func @transform_3(%arg0: i32, %arg1: i32) -> (i32, i32) {
    %c0_i32 = arith.constant 0 : i32
    %c0_i32_0 = arith.constant 0 : i32
    %c0_i32_1 = arith.constant 0 : i32
    return %c0_i32, %c0_i32_0 : i32, i32
  }
  func.func @transform_4(%arg0: i32, %arg1: i32) -> (i32, i32) {
    %c0_i32 = arith.constant 0 : i32
    %c0_i32_0 = arith.constant 0 : i32
    %c0_i32_1 = arith.constant 0 : i32
    return %c0_i32, %c0_i32_0 : i32, i32
  }
  func.func @transform_5(%arg0: i32, %arg1: i32) -> (i32, i32) {
    %c0_i32 = arith.constant 0 : i32
    %c0_i32_0 = arith.constant 0 : i32
    %c0_i32_1 = arith.constant 0 : i32
    return %c0_i32, %c0_i32_0 : i32, i32
  }
  func.func @transform_6(%arg0: i32, %arg1: i32) -> (i32, i32) {
    %c0_i32 = arith.constant 0 : i32
    %c0_i32_0 = arith.constant 0 : i32
    %c0_i32_1 = arith.constant 0 : i32
    return %c0_i32, %c0_i32_0 : i32, i32
  }
  func.func @transform_7(%arg0: i32, %arg1: i32) -> (i32, i32) {
    %c0_i32 = arith.constant 0 : i32
    %c0_i32_0 = arith.constant 0 : i32
    %c0_i32_1 = arith.constant 0 : i32
    return %c0_i32, %c0_i32_0 : i32, i32
  }
  func.func @transform_8(%arg0: i32, %arg1: i32) -> (i32, i32, i32) {
    %c0_i32 = arith.constant 0 : i32
    %c0_i32_0 = arith.constant 0 : i32
    return %arg0, %arg1, %c0_i32 : i32, i32, i32
  }
}

</mosaic_0001>

<llo_original>
// kernel: tpu_custom_call.1
$region0: #{tpu_custom_call.1}
  #allocation0 [shape = 'u32[]', space=smem, size = 0x4, offset = 0x4, fixed_abs, tag = 'smem constant byte address 0x4 - core index']
  #allocation1 [shape = 'u32[144,128]{1,0:T(1,128)}', space=vmem, size = 0x12000, scoped, tag = 'internal scratch']
  #allocation2 [shape = 'bf16[32,128]{1,0:T(16,128)(2,1)}', space=vmem, size = 0x2000, scoped, tag = 'scratch operand']
  %s0 = inlined_call_operand.hbm [shape: bf16[2,48,128], index: 0, kind: input, shape index: {}]
  %s1 = inlined_call_operand.hbm [shape: bf16[2,48,128], index: 1, kind: input, shape index: {}]
  %s2 = inlined_call_operand.hbm [shape: bf16[384,128], index: 2, kind: input, shape index: {}]
  %s3 = inlined_call_operand.vmem [shape: f32[1,128], index: 3, kind: input, shape index: {}]
  %s4 = inlined_call_operand.hbm [shape: bf16[384,128], index: 4, kind: input, shape index: {}]
  %s5 = inlined_call_operand.vmem [shape: f32[1,128], index: 5, kind: input, shape index: {}]
  %s6 = inlined_call_operand.hbm [shape: bf16[128,128], index: 6, kind: input, shape index: {}]
  %s7 = inlined_call_operand.vmem [shape: f32[1,128], index: 7, kind: input, shape index: {}]
  %s8 = inlined_call_operand.hbm [shape: f32[2,48,128], index: 8, kind: output, shape index: {}]
  %s9 = sld [smem:[#allocation0]]
  $region93: #{tpu_custom_call.1} parent=0
    _
  %s11 = ssub.s32 1, %s9
  %s12 = scalar_select 0, %s11, %s9
  $region1: #{tpu_custom_call.1} parent=0
    #allocation3 [shape = 'u8[8192]{0}', space=vmem, size = 0x2000, scoped, tag = 'input window, operand 0']
    #allocation4 [shape = 's32[2]{0}', space=sflag, size = 0x8, scoped, tag = 'scoped memory for tpu_custom_call.1']
    #allocation5 [shape = 's32[2]{0}', space=sflag, size = 0x8, scoped, tag = 'scoped memory for tpu_custom_call.1']
    #allocation6 [shape = 'u8[8192]{0}', space=vmem, size = 0x2000, scoped, tag = 'input window, operand 1']
    #allocation7 [shape = 's32[2]{0}', space=sflag, size = 0x8, scoped, tag = 'scoped memory for tpu_custom_call.1']
    #allocation8 [shape = 'u8[98304]{0}', space=vmem, size = 0x18000, scoped, tag = 'input window, operand 2, single buffered']
    #allocation9 [shape = 'u8[98304]{0}', space=vmem, size = 0x18000, scoped, tag = 'input window, operand 4, single buffered']
    #allocation10 [shape = 's32[1]{0}', space=sflag, size = 0x4, scoped, tag = 'scoped memory for tpu_custom_call.1']
    #allocation11 [shape = 'u8[32768]{0}', space=vmem, size = 0x8000, scoped, tag = 'input window, operand 6, single buffered']
    #allocation12 [shape = 'u8[16384]{0}', space=vmem, size = 0x4000, scoped, tag = 'output window, operand 0']
    %13 = vsyncpa [#allocation4], 0
    %s14 = scalar_lea.sflag [#allocation4], 1
    %15 = vsyncpa %s14, 0
    %16 = vsyncpa [#allocation7], 0
    %s17 = scalar_lea.sflag [#allocation7], 1
    %18 = vsyncpa %s17, 0
    %19 = vsyncpa [#allocation10], 0
    %20 = vsyncpa [#allocation5], 0
    %s21 = scalar_lea.sflag [#allocation5], 1
    %22 = vsyncpa %s21, 0
    loop: start=0, step=1, limit=8
    $region2: #{tpu_custom_call.1} parent=1 // loop_pre_header
      _
    $region3: #{tpu_custom_call.1} parent=1 // loop_header
      %s24 = sphi 0, %s28
      %p25 = scmp.ge.s32.totalorder %s24, 8
      %s31 = sphi 0, %s43
      %s32 = sphi 0, %s39
      %s33 = sphi 0, %s31
      %s34 = sphi 0, %s32
      %s35 = sphi 0, %s33
      %s36 = sphi 0, %s34
      %s54 = sphi 0, %s56
      %s57 = sphi 0, %s54
      %s58 = sphi 0, %s57
      %s74 = sphi 0, %s58
      %s82 = sphi 0, %s84
      %s85 = sphi 0, %s82
      %s86 = sphi 0, %s85
      %s102 = sphi 0, %s86
      %s106 = sphi 0, %s106
      %s108 = sphi 0, %s106
      %s109 = sphi 0, %s108
      %s123 = sphi 0, %s109
      %s127 = sphi 0, %s127
      %s129 = sphi 0, %s127
      %s130 = sphi 0, %s129
      %s144 = sphi 0, %s130
      %s148 = sphi 0, %s148
      %s150 = sphi 0, %s148
      %s151 = sphi 0, %s150
      %s165 = sphi 0, %s151
      %s169 = sphi 0, %s169
      %s171 = sphi 0, %s169
      %s172 = sphi 0, %s171
      %s186 = sphi 0, %s172
      %s190 = sphi 0, %s190
      %s192 = sphi 0, %s190
      %s193 = sphi 0, %s192
      %s207 = sphi 0, %s193
      %s211 = sphi 0, %s211
      %s213 = sphi 0, %s211
      %s214 = sphi 0, %s213
      %s228 = sphi 0, %s214
      %s236 = sphi 0, %s238
      %s239 = sphi 0, %s236
      %s240 = sphi 0, %s239
      %s256 = sphi 0, %s240
    $region4: #{tpu_custom_call.1} parent=1 // loop_header_branch
      %27 = sbr.rel (%p25) target = $region8
    $region5: #{tpu_custom_call.1} parent=1 // loop_body
      %s29 = ssub.s32 %s24, 1
      %s30 = ssub.s32 %s24, 2
      %s37 = sadd.s32 1, %s32
      %p38 = scmp.ge.s32.totalorder %s37, 3
      %s39 = scalar_select %p38, 0, %s37
      %s40 = sadd.s32 1, %s31
      %s41 = scalar_select %p38, %s40, %s31
      %p42 = scmp.ge.s32.totalorder %s41, 2
      %s43 = scalar_select %p42, 0, %s41
      %s44 = ssub.s32 %s32, 1
      %p45 = scmp.gt.s32.totalorder %s44, 0
      %s46 = scalar_select %p45, %s44, 0
      %s47 = ssub.s32 %s39, 1
      %p48 = scmp.gt.s32.totalorder %s47, 0
      %s49 = scalar_select %p48, %s47, 0
      %s50 = ssub.s32 %s31, %s43
      %s51 = ssub.s32 %s46, %s49
      %s52 = sor.u32 %s50, %s51
      %p53 = scmp.eq.s32.totalorder %s52, 0
      %s55 = sadd.s32 %s54, 1
      %s56 = scalar_select %p53, %s54, %s55
      %p59 = pneg %p53
      %p60 = scmp.eq.s32.totalorder %s24, 5
      %p61 = por %p59, %p60
      %p62 = scmp.ne.s32.totalorder %s54, %s57
      %p63 = scmp.eq.s32.totalorder %s24, 0
      %p64 = por %p62, %p63
      %p65 = scmp.ne.s32.totalorder %s54, %s57
      %p66 = scmp.eq.s32.totalorder %s29, 5
      %p67 = por %p65, %p66
      %p68 = scmp.ne.s32.totalorder %s57, %s58
      %p69 = scmp.eq.s32.totalorder %s29, 0
      %p70 = por %p68, %p69
      %p71 = scmp.ne.s32.totalorder %s57, %s58
      %p72 = scmp.eq.s32.totalorder %s30, 5
      %p73 = por %p71, %p72
      %p75 = scmp.ne.s32.totalorder %s58, %s74
      %p76 = scmp.eq.s32.totalorder %s30, 0
      %p77 = por %p75, %p76
      %s78 = ssub.s32 %s31, %s43
      %s79 = ssub.s32 %s32, %s39
      %s80 = sor.u32 %s78, %s79
      %p81 = scmp.eq.s32.totalorder %s80, 0
      %s83 = sadd.s32 %s82, 1
      %s84 = scalar_select %p81, %s82, %s83
      %p87 = pneg %p81
      %p88 = scmp.eq.s32.totalorder %s24, 5
      %p89 = por %p87, %p88
      %p90 = scmp.ne.s32.totalorder %s82, %s85
      %p91 = scmp.eq.s32.totalorder %s24, 0
      %p92 = por %p90, %p91
      %p93 = scmp.ne.s32.totalorder %s82, %s85
      %p94 = scmp.eq.s32.totalorder %s29, 5
      %p95 = por %p93, %p94
      %p96 = scmp.ne.s32.totalorder %s85, %s86
      %p97 = scmp.eq.s32.totalorder %s29, 0
      %p98 = por %p96, %p97
      %p99 = scmp.ne.s32.totalorder %s85, %s86
      %p100 = scmp.eq.s32.totalorder %s30, 5
      %p101 = por %p99, %p100
      %p103 = scmp.ne.s32.totalorder %s86, %s102
      %p104 = scmp.eq.s32.totalorder %s30, 0
      %p105 = por %p103, %p104
      %s107 = sadd.s32 %s106, 1
      %p110 = scmp.eq.s32.totalorder %s24, 5
      %p111 = scmp.ne.s32.totalorder %s106, %s108
      %p112 = scmp.eq.s32.totalorder %s24, 0
      %p113 = por %p111, %p112
      %p114 = scmp.ne.s32.totalorder %s106, %s108
      %p115 = scmp.eq.s32.totalorder %s29, 5
      %p116 = por %p114, %p115
      %p117 = scmp.ne.s32.totalorder %s108, %s109
      %p118 = scmp.eq.s32.totalorder %s29, 0
      %p119 = por %p117, %p118
      %p120 = scmp.ne.s32.totalorder %s108, %s109
      %p121 = scmp.eq.s32.totalorder %s30, 5
      %p122 = por %p120, %p121
      %p124 = scmp.ne.s32.totalorder %s109, %s123
      %p125 = scmp.eq.s32.totalorder %s30, 0
      %p126 = por %p124, %p125
      %s128 = sadd.s32 %s127, 1
      %p131 = scmp.eq.s32.totalorder %s24, 5
      %p132 = scmp.ne.s32.totalorder %s127, %s129
      %p133 = scmp.eq.s32.totalorder %s24, 0
      %p134 = por %p132, %p133
      %p135 = scmp.ne.s32.totalorder %s127, %s129
      %p136 = scmp.eq.s32.totalorder %s29, 5
      %p137 = por %p135, %p136
      %p138 = scmp.ne.s32.totalorder %s129, %s130
      %p139 = scmp.eq.s32.totalorder %s29, 0
      %p140 = por %p138, %p139
      %p141 = scmp.ne.s32.totalorder %s129, %s130
      %p142 = scmp.eq.s32.totalorder %s30, 5
      %p143 = por %p141, %p142
      %p145 = scmp.ne.s32.totalorder %s130, %s144
      %p146 = scmp.eq.s32.totalorder %s30, 0
      %p147 = por %p145, %p146
      %s149 = sadd.s32 %s148, 1
      %p152 = scmp.eq.s32.totalorder %s24, 5
      %p153 = scmp.ne.s32.totalorder %s148, %s150
      %p154 = scmp.eq.s32.totalorder %s24, 0
      %p155 = por %p153, %p154
      %p156 = scmp.ne.s32.totalorder %s148, %s150
      %p157 = scmp.eq.s32.totalorder %s29, 5
      %p158 = por %p156, %p157
      %p159 = scmp.ne.s32.totalorder %s150, %s151
      %p160 = scmp.eq.s32.totalorder %s29, 0
      %p161 = por %p159, %p160
      %p162 = scmp.ne.s32.totalorder %s150, %s151
      %p163 = scmp.eq.s32.totalorder %s30, 5
      %p164 = por %p162, %p163
      %p166 = scmp.ne.s32.totalorder %s151, %s165
      %p167 = scmp.eq.s32.totalorder %s30, 0
      %p168 = por %p166, %p167
      %s170 = sadd.s32 %s169, 1
      %p173 = scmp.eq.s32.totalorder %s24, 5
      %p174 = scmp.ne.s32.totalorder %s169, %s171
      %p175 = scmp.eq.s32.totalorder %s24, 0
      %p176 = por %p174, %p175
      %p177 = scmp.ne.s32.totalorder %s169, %s171
      %p178 = scmp.eq.s32.totalorder %s29, 5
      %p179 = por %p177, %p178
      %p180 = scmp.ne.s32.totalorder %s171, %s172
      %p181 = scmp.eq.s32.totalorder %s29, 0
      %p182 = por %p180, %p181
      %p183 = scmp.ne.s32.totalorder %s171, %s172
      %p184 = scmp.eq.s32.totalorder %s30, 5
      %p185 = por %p183, %p184
      %p187 = scmp.ne.s32.totalorder %s172, %s186
      %p188 = scmp.eq.s32.totalorder %s30, 0
      %p189 = por %p187, %p188
      %s191 = sadd.s32 %s190, 1
      %p194 = scmp.eq.s32.totalorder %s24, 5
      %p195 = scmp.ne.s32.totalorder %s190, %s192
      %p196 = scmp.eq.s32.totalorder %s24, 0
      %p197 = por %p195, %p196
      %p198 = scmp.ne.s32.totalorder %s190, %s192
      %p199 = scmp.eq.s32.totalorder %s29, 5
      %p200 = por %p198, %p199
      %p201 = scmp.ne.s32.totalorder %s192, %s193
      %p202 = scmp.eq.s32.totalorder %s29, 0
      %p203 = por %p201, %p202
      %p204 = scmp.ne.s32.totalorder %s192, %s193
      %p205 = scmp.eq.s32.totalorder %s30, 5
      %p206 = por %p204, %p205
      %p208 = scmp.ne.s32.totalorder %s193, %s207
      %p209 = scmp.eq.s32.totalorder %s30, 0
      %p210 = por %p208, %p209
      %s212 = sadd.s32 %s211, 1
      %p215 = scmp.eq.s32.totalorder %s24, 5
      %p216 = scmp.ne.s32.totalorder %s211, %s213
      %p217 = scmp.eq.s32.totalorder %s24, 0
      %p218 = por %p216, %p217
      %p219 = scmp.ne.s32.totalorder %s211, %s213
      %p220 = scmp.eq.s32.totalorder %s29, 5
      %p221 = por %p219, %p220
      %p222 = scmp.ne.s32.totalorder %s213, %s214
      %p223 = scmp.eq.s32.totalorder %s29, 0
      %p224 = por %p222, %p223
      %p225 = scmp.ne.s32.totalorder %s213, %s214
      %p226 = scmp.eq.s32.totalorder %s30, 5
      %p227 = por %p225, %p226
      %p229 = scmp.ne.s32.totalorder %s214, %s228
      %p230 = scmp.eq.s32.totalorder %s30, 0
      %p231 = por %p229, %p230
      %s232 = ssub.s32 %s31, %s43
      %s233 = ssub.s32 %s32, %s39
      %s234 = sor.u32 %s232, %s233
      %p235 = scmp.eq.s32.totalorder %s234, 0
      %s237 = sadd.s32 %s236, 1
      %s238 = scalar_select %p235, %s236, %s237
      %p241 = pneg %p235
      %p242 = scmp.eq.s32.totalorder %s24, 5
      %p243 = por %p241, %p242
      %p244 = scmp.ne.s32.totalorder %s236, %s239
      %p245 = scmp.eq.s32.totalorder %s24, 0
      %p246 = por %p244, %p245
      %p247 = scmp.ne.s32.totalorder %s236, %s239
      %p248 = scmp.eq.s32.totalorder %s29, 5
      %p249 = por %p247, %p248
      %p250 = scmp.ne.s32.totalorder %s239, %s240
      %p251 = scmp.eq.s32.totalorder %s29, 0
      %p252 = por %p250, %p251
      %p253 = scmp.ne.s32.totalorder %s239, %s240
      %p254 = scmp.eq.s32.totalorder %s30, 5
      %p255 = por %p253, %p254
      %p257 = scmp.ne.s32.totalorder %s240, %s256
      %p258 = scmp.eq.s32.totalorder %s30, 0
      %p259 = por %p257, %p258
      %p260 = scmp.le.s32.totalorder 1, %s24
      %p261 = scmp.lt.s32.totalorder %s24, 7
      %p262 = pnand %p260, %p261
      %p263 = pneg %p262
      // Predicated region
      $region9: #{tpu_custom_call.1} parent=5 // pred_check
        _
      $region10: #{tpu_custom_call.1} parent=5 // pred_check_branch
        %265 = sbr.rel (%p262) target = $region12
      $region11: #{tpu_custom_call.1} parent=5 // pred_region
        %s266 = ssub.s32 %s24, 1
        // Predicated region
        $region13: #{tpu_custom_call.1} parent=11 // pred_check
          %p267 = pneg %p119
        $region14: #{tpu_custom_call.1} parent=11 // pred_check_branch
          %269 = sbr.rel (%p267) target = $region16
        $region15: #{tpu_custom_call.1} parent=11 // pred_region
          %s271 = ssub.s32 3072, 3072
          %272 = vsyncadd [#allocation7], %s271
          %s273 = sshll.u32 [#allocation8], 4
          %s274 = int_to_ptr.vmem [resolvable:$true] %s273
          %279 = dma.hbm_to_vmem [thread:$0]  %s2, 3072, %s274, [#allocation7], 64, 64, 4
        $region16: #{tpu_custom_call.1} parent=11 // pred_fallthru
          _
        // Predicated region
        $region17: #{tpu_custom_call.1} parent=11 // pred_check
          %p280 = pneg %p140
        $region18: #{tpu_custom_call.1} parent=11 // pred_check_branch
          %282 = sbr.rel (%p280) target = $region20
        $region19: #{tpu_custom_call.1} parent=11 // pred_region
          _
        $region20: #{tpu_custom_call.1} parent=11 // pred_fallthru
          _
        // Predicated region
        $region21: #{tpu_custom_call.1} parent=11 // pred_check
          %p283 = pneg %p161
        $region22: #{tpu_custom_call.1} parent=11 // pred_check_branch
          %285 = sbr.rel (%p283) target = $region24
        $region23: #{tpu_custom_call.1} parent=11 // pred_region
          %s287 = ssub.s32 3072, 3072
          %288 = vsyncadd [#allocation10], %s287
          %s289 = sshll.u32 [#allocation9], 4
          %s290 = int_to_ptr.vmem [resolvable:$true] %s289
          %295 = dma.hbm_to_vmem [thread:$0]  %s4, 3072, %s290, [#allocation10], 64, 64, 4
        $region24: #{tpu_custom_call.1} parent=11 // pred_fallthru
          _
        // Predicated region
        $region25: #{tpu_custom_call.1} parent=11 // pred_check
          %p296 = pneg %p182
        $region26: #{tpu_custom_call.1} parent=11 // pred_check_branch
          %298 = sbr.rel (%p296) target = $region28
        $region27: #{tpu_custom_call.1} parent=11 // pred_region
          _
        $region28: #{tpu_custom_call.1} parent=11 // pred_fallthru
          _
        // Predicated region
        $region29: #{tpu_custom_call.1} parent=11 // pred_check
          %p299 = pneg %p203
        $region30: #{tpu_custom_call.1} parent=11 // pred_check_branch
          %301 = sbr.rel (%p299) target = $region32
        $region31: #{tpu_custom_call.1} parent=11 // pred_region
          %s303 = ssub.s32 1024, 1024
          %304 = vsyncadd [#allocation10], %s303
          %s305 = sshll.u32 [#allocation11], 4
          %s306 = int_to_ptr.vmem [resolvable:$true] %s305
          %311 = dma.hbm_to_vmem [thread:$0]  %s6, 1024, %s306, [#allocation10], 64, 64, 4
        $region32: #{tpu_custom_call.1} parent=11 // pred_fallthru
          _
        // Predicated region
        $region33: #{tpu_custom_call.1} parent=11 // pred_check
          %p312 = pneg %p224
        $region34: #{tpu_custom_call.1} parent=11 // pred_check_branch
          %314 = sbr.rel (%p312) target = $region36
        $region35: #{tpu_custom_call.1} parent=11 // pred_region
          _
        $region36: #{tpu_custom_call.1} parent=11 // pred_fallthru
          _
      $region12: #{tpu_custom_call.1} parent=5 // pred_fallthru
        _
      %p315 = scmp.lt.s32.totalorder %s24, 6
      // Predicated region
      $region37: #{tpu_custom_call.1} parent=5 // pred_check
        %p316 = pneg %p315
      $region38: #{tpu_custom_call.1} parent=5 // pred_check_branch
        %318 = sbr.rel (%p316) target = $region40
      $region39: #{tpu_custom_call.1} parent=5 // pred_region
        // Predicated region
        $region41: #{tpu_custom_call.1} parent=39 // pred_check
          %p319 = pneg %p64
        $region42: #{tpu_custom_call.1} parent=39 // pred_check_branch
          %321 = sbr.rel (%p319) target = $region44
        $region43: #{tpu_custom_call.1} parent=39 // pred_region
          %s322 = sand.u32 %s54, 1
          %s323 = scalar_lea.sflag [#allocation4], %s322
          %s324 = sand.u32 %s54, 1
          %s325 = smul.addr %s324, 8
          %s326 = scalar_lea.vmem [#allocation3], %s325
          %s327 = ssub.s32 %s32, 1
          %p328 = scmp.gt.s32.totalorder %s327, 0
          %s329 = scalar_select %p328, %s327, 0
          %s330 = smul.u32 2, %s329
          %s332 = ssub.s32 128, 128
          %333 = vsyncadd %s323, %s332
          %s334 = smul.addr %s31, 6
          %s335 = sadd.s32 %s330, %s334
          %s336 = smul.addr %s335, 64
          %s337 = scalar_lea.hbm %s0, %s336
          %s338 = sshll.u32 %s326, 4
          %s339 = int_to_ptr.vmem [resolvable:$true] %s338
          %344 = dma.hbm_to_vmem [thread:$0]  %s337, 128, %s339, %s323, 64, 64, 4
        $region44: #{tpu_custom_call.1} parent=39 // pred_fallthru
          _
        // Predicated region
        $region45: #{tpu_custom_call.1} parent=39 // pred_check
          %p345 = pneg %p92
        $region46: #{tpu_custom_call.1} parent=39 // pred_check_branch
          %347 = sbr.rel (%p345) target = $region48
        $region47: #{tpu_custom_call.1} parent=39 // pred_region
          %s348 = sand.u32 %s24, 1
          %s349 = scalar_lea.sflag [#allocation7], %s348
          %s350 = sand.u32 %s82, 1
          %s351 = smul.addr %s350, 8
          %s352 = scalar_lea.vmem [#allocation6], %s351
          %s353 = smul.u32 2, %s32
          %s355 = ssub.s32 128, 128
          %356 = vsyncadd %s349, %s355
          %s357 = smul.addr %s31, 6
          %s358 = sadd.s32 %s353, %s357
          %s359 = smul.addr %s358, 64
          %s360 = scalar_lea.hbm %s1, %s359
          %s361 = sshll.u32 %s352, 4
          %s362 = int_to_ptr.vmem [resolvable:$true] %s361
          %367 = dma.hbm_to_vmem [thread:$0]  %s360, 128, %s362, %s349, 64, 64, 4
        $region48: #{tpu_custom_call.1} parent=39 // pred_fallthru
          _
      $region40: #{tpu_custom_call.1} parent=5 // pred_fallthru
        _
      %p368 = scmp.le.s32.totalorder 1, %s24
      %p369 = scmp.lt.s32.totalorder %s24, 7
      %p370 = pnand %p368, %p369
      %p371 = pneg %p370
      // Predicated region
      $region49: #{tpu_custom_call.1} parent=5 // pred_check
        _
      $region50: #{tpu_custom_call.1} parent=5 // pred_check_branch
        %373 = sbr.rel (%p370) target = $region52
      $region51: #{tpu_custom_call.1} parent=5 // pred_region
        %s374 = ssub.s32 %s24, 1
        %s375 = sand.u32 %s57, 1
        %s376 = scalar_lea.sflag [#allocation4], %s375
        %s377 = sand.u32 %s57, 1
        %s378 = smul.addr %s377, 8
        %s379 = scalar_lea.vmem [#allocation3], %s378
        // Predicated region
        $region53: #{tpu_custom_call.1} parent=51 // pred_check
          %p380 = pneg %p70
        $region54: #{tpu_custom_call.1} parent=51 // pred_check_branch
          %382 = sbr.rel (%p380) target = $region56
        $region55: #{tpu_custom_call.1} parent=51 // pred_region
          %383 = dma.done %s376, 128
        $region56: #{tpu_custom_call.1} parent=51 // pred_fallthru
          _
        %s384 = sand.u32 %s29, 1
        %s385 = scalar_lea.sflag [#allocation7], %s384
        %s386 = sand.u32 %s85, 1
        %s387 = smul.addr %s386, 8
        %s388 = scalar_lea.vmem [#allocation6], %s387
        // Predicated region
        $region57: #{tpu_custom_call.1} parent=51 // pred_check
          %p389 = pneg %p98
        $region58: #{tpu_custom_call.1} parent=51 // pred_check_branch
          %391 = sbr.rel (%p389) target = $region60
        $region59: #{tpu_custom_call.1} parent=51 // pred_region
          %392 = dma.done %s385, 128
        $region60: #{tpu_custom_call.1} parent=51 // pred_fallthru
          _
        // Predicated region
        $region61: #{tpu_custom_call.1} parent=51 // pred_check
          %p393 = pneg %p119
        $region62: #{tpu_custom_call.1} parent=51 // pred_check_branch
          %395 = sbr.rel (%p393) target = $region64
        $region63: #{tpu_custom_call.1} parent=51 // pred_region
          %396 = dma.done [#allocation7], 3072
        $region64: #{tpu_custom_call.1} parent=51 // pred_fallthru
          _
        // Predicated region
        $region65: #{tpu_custom_call.1} parent=51 // pred_check
          %p397 = pneg %p161
        $region66: #{tpu_custom_call.1} parent=51 // pred_check_branch
          %399 = sbr.rel (%p397) target = $region68
        $region67: #{tpu_custom_call.1} parent=51 // pred_region
          %400 = dma.done [#allocation10], 3072
        $region68: #{tpu_custom_call.1} parent=51 // pred_fallthru
          _
        // Predicated region
        $region69: #{tpu_custom_call.1} parent=51 // pred_check
          %p401 = pneg %p203
        $region70: #{tpu_custom_call.1} parent=51 // pred_check_branch
          %403 = sbr.rel (%p401) target = $region72
        $region71: #{tpu_custom_call.1} parent=51 // pred_region
          %404 = dma.done [#allocation10], 1024
        $region72: #{tpu_custom_call.1} parent=51 // pred_fallthru
          _
        %s405 = sand.u32 %s57, 1
        %s406 = scalar_lea.sflag [#allocation4], %s405
        %s407 = sand.u32 %s57, 1
        %s408 = smul.addr %s407, 8
        %s409 = scalar_lea.vmem [#allocation3], %s408
        %p410 = pneg %p70
        %p411 = pneg %p67
        %s412 = sand.u32 %s29, 1
        %s413 = scalar_lea.sflag [#allocation7], %s412
        %s414 = sand.u32 %s85, 1
        %s415 = smul.addr %s414, 8
        %s416 = scalar_lea.vmem [#allocation6], %s415
        %p417 = pneg %p98
        %p418 = pneg %p95
        %p419 = pneg %p119
        %p420 = pneg %p116
        %p421 = pneg %p140
        %p422 = pneg %p137
        %p423 = pneg %p161
        %p424 = pneg %p158
        %p425 = pneg %p182
        %p426 = pneg %p179
        %p427 = pneg %p203
        %p428 = pneg %p200
        %p429 = pneg %p224
        %p430 = pneg %p221
        %p431 = pneg %p252
        %p432 = pneg %p249
        %s433 = sand.u32 %s239, 1
        %s434 = scalar_lea.sflag [#allocation5], %s433
        %s435 = sand.u32 %s239, 1
        %s436 = smul.addr %s435, 16
        %s437 = scalar_lea.vmem [#allocation12], %s436
        %s438 = ssub.s32 %s34, 1
        %p439 = scmp.gt.s32.totalorder %s438, 0
        %s440 = scalar_select %p439, %s438, 0
        %s441 = smul.u32 2, %s440
        %s442 = smul.u32 2, %s34
        %s443 = smul.u32 2, %s34
        %p445 = scmp.eq.s32.totalorder %s34, 0
        // Predicated region
        $region73: #{tpu_custom_call.1} parent=51 // pred_check
          %p446 = pneg %p445
        $region74: #{tpu_custom_call.1} parent=51 // pred_check_branch
          %448 = sbr.rel (%p446) target = $region76
        $region75: #{tpu_custom_call.1} parent=51 // pred_region
          %449 = vst [vmem:[#allocation2] sm:$0xff] 0
        $region76: #{tpu_custom_call.1} parent=51 // pred_fallthru
          _
        %p450 = scmp.gt.s32.totalorder %s34, 0
        // Predicated region
        $region77: #{tpu_custom_call.1} parent=51 // pred_check
          %p451 = pneg %p450
        $region78: #{tpu_custom_call.1} parent=51 // pred_check_branch
          %453 = sbr.rel (%p451) target = $region80
        $region79: #{tpu_custom_call.1} parent=51 // pred_region
          %v454 = vld [vmem:[%s379] sm:$0xf]
          %v455 = vld [vmem:[%s379 + $0x4] sm:$0xf]
          %v458 = vunpack.c.l.b16 %v454
          %v459 = vunpack.c.l.b16 %v455
          %v460 = vpack.c.b16 %v459, %v458
          %462 = vst [vmem:[#allocation2] sm:$0xff] %v460
        $region80: #{tpu_custom_call.1} parent=51 // pred_fallthru
          _
        %v463 = vld [vmem:[%s388] sm:$0xf]
        %v464 = vld [vmem:[%s388 + $0x4] sm:$0xf]
        %v467 = vunpack.c.l.b16 %v463
        %v468 = vunpack.c.l.b16 %v464
        %v469 = vpack.c.b16 %v468, %v467
        %471 = vst [vmem:[#allocation2 + $0x8] sm:$0xff] %v469
        %v472 = vld [vmem:[#allocation2] sm:$0xff]
        %v473 = vld [vmem:[#allocation2 + $0x8] sm:$0xff]
        %vm476 = vcmask 1046528
        %v477 = vrot.slane %v472, 1
        %v478 = vrot.slane %v473, 1
        %v479 = vsel %vm476, %v477, %v478
        %vm480 = vcmask 1045504
        %v481 = vrot.slane %v472, 2
        %v482 = vrot.slane %v473, 2
        %v483 = vsel %vm480, %v481, %v482
        %v484 = vld [vmem:[#allocation8] sm:$0xf]
        %v485 = vld [vmem:[#allocation8 + $0x4] sm:$0xf]
        %v486 = vld [vmem:[#allocation8 + $0x8] sm:$0xf]
        %v487 = vld [vmem:[#allocation8 + $0xc] sm:$0xf]
        %v488 = vld [vmem:[#allocation8 + $0x10] sm:$0xf]
        %v489 = vld [vmem:[#allocation8 + $0x14] sm:$0xf]
        %v490 = vld [vmem:[#allocation8 + $0x18] sm:$0xf]
        %v491 = vld [vmem:[#allocation8 + $0x1c] sm:$0xf]
        %v492 = vld [vmem:[#allocation8 + $0x20] sm:$0xf]
        %v493 = vld [vmem:[#allocation8 + $0x24] sm:$0xf]
        %v494 = vld [vmem:[#allocation8 + $0x28] sm:$0xf]
        %v495 = vld [vmem:[#allocation8 + $0x2c] sm:$0xf]
        %v496 = vld [vmem:[#allocation8 + $0x30] sm:$0xf]
        %v497 = vld [vmem:[#allocation8 + $0x34] sm:$0xf]
        %v498 = vld [vmem:[#allocation8 + $0x38] sm:$0xf]
        %v499 = vld [vmem:[#allocation8 + $0x3c] sm:$0xf]
        %v500 = vld [vmem:[#allocation8 + $0x40] sm:$0xf]
        %v501 = vld [vmem:[#allocation8 + $0x44] sm:$0xf]
        %v502 = vld [vmem:[#allocation8 + $0x48] sm:$0xf]
        %v503 = vld [vmem:[#allocation8 + $0x4c] sm:$0xf]
        %v504 = vld [vmem:[#allocation8 + $0x50] sm:$0xf]
        %v505 = vld [vmem:[#allocation8 + $0x54] sm:$0xf]
        %v506 = vld [vmem:[#allocation8 + $0x58] sm:$0xf]
        %v507 = vld [vmem:[#allocation8 + $0x5c] sm:$0xf]
        %v508 = vld [vmem:[#allocation8 + $0x60] sm:$0xf]
        %v509 = vld [vmem:[#allocation8 + $0x64] sm:$0xf]
        %v510 = vld [vmem:[#allocation8 + $0x68] sm:$0xf]
        %v511 = vld [vmem:[#allocation8 + $0x6c] sm:$0xf]
        %v512 = vld [vmem:[#allocation8 + $0x70] sm:$0xf]
        %v513 = vld [vmem:[#allocation8 + $0x74] sm:$0xf]
        %v514 = vld [vmem:[#allocation8 + $0x78] sm:$0xf]
        %v515 = vld [vmem:[#allocation8 + $0x7c] sm:$0xf]
        %v516 = vld [vmem:[#allocation8 + $0x80] sm:$0xf]
        %v517 = vld [vmem:[#allocation8 + $0x84] sm:$0xf]
        %v518 = vld [vmem:[#allocation8 + $0x88] sm:$0xf]
        %v519 = vld [vmem:[#allocation8 + $0x8c] sm:$0xf]
        %v520 = vld [vmem:[#allocation8 + $0x90] sm:$0xf]
        %v521 = vld [vmem:[#allocation8 + $0x94] sm:$0xf]
        %v522 = vld [vmem:[#allocation8 + $0x98] sm:$0xf]
        %v523 = vld [vmem:[#allocation8 + $0x9c] sm:$0xf]
        %v524 = vld [vmem:[#allocation8 + $0xa0] sm:$0xf]
        %v525 = vld [vmem:[#allocation8 + $0xa4] sm:$0xf]
        %v526 = vld [vmem:[#allocation8 + $0xa8] sm:$0xf]
        %v527 = vld [vmem:[#allocation8 + $0xac] sm:$0xf]
        %v528 = vld [vmem:[#allocation8 + $0xb0] sm:$0xf]
        %v529 = vld [vmem:[#allocation8 + $0xb4] sm:$0xf]
        %v530 = vld [vmem:[#allocation8 + $0xb8] sm:$0xf]
        %v531 = vld [vmem:[#allocation8 + $0xbc] sm:$0xf]
        %v532 = vld [vmem:[%s3] sm:$0x1]
        %v534 = vlaneseq
        %v535 = vshrl.u32 %v534, 7
        %v536 = vsub.s32 0, %v535
        %v537 = vrot.slane %v532, %v536
        %v539 = vrot.slane %v479, 2
        %v540 = vrot.slane %v478, 2
        %v541 = vsel %vm480, %v539, %v540
        %v542 = vrot.slane %v483, 2
        %v543 = vrot.slane %v482, 2
        %v544 = vsel %vm480, %v542, %v543
        %v599 = vunpack.c.l.b16 %v484
        %v600 = vunpack.c.l.b16 %v485
        %v601 = vunpack.c.l.b16 %v486
        %v602 = vunpack.c.l.b16 %v487
        %v603 = vunpack.c.l.b16 %v488
        %v604 = vunpack.c.l.b16 %v489
        %v605 = vunpack.c.l.b16 %v490
        %v606 = vunpack.c.l.b16 %v491
        %v607 = vunpack.c.l.b16 %v492
        %v608 = vunpack.c.l.b16 %v493
        %v609 = vunpack.c.l.b16 %v494
        %v610 = vunpack.c.l.b16 %v495
        %v611 = vunpack.c.l.b16 %v496
        %v612 = vunpack.c.l.b16 %v497
        %v613 = vunpack.c.l.b16 %v498
        %v614 = vunpack.c.l.b16 %v499
        %v615 = vunpack.c.l.b16 %v500
        %v616 = vunpack.c.l.b16 %v501
        %v617 = vunpack.c.l.b16 %v502
        %v618 = vunpack.c.l.b16 %v503
        %v619 = vunpack.c.l.b16 %v504
        %v620 = vunpack.c.l.b16 %v505
        %v621 = vunpack.c.l.b16 %v506
        %v622 = vunpack.c.l.b16 %v507
        %v623 = vunpack.c.l.b16 %v508
        %v624 = vunpack.c.l.b16 %v509
        %v625 = vunpack.c.l.b16 %v510
        %v626 = vunpack.c.l.b16 %v511
        %v627 = vunpack.c.l.b16 %v512
        %v628 = vunpack.c.l.b16 %v513
        %v629 = vunpack.c.l.b16 %v514
        %v630 = vunpack.c.l.b16 %v515
        %v631 = vunpack.c.l.b16 %v516
        %v632 = vunpack.c.l.b16 %v517
        %v633 = vunpack.c.l.b16 %v518
        %v634 = vunpack.c.l.b16 %v519
        %v635 = vunpack.c.l.b16 %v520
        %v636 = vunpack.c.l.b16 %v521
        %v637 = vunpack.c.l.b16 %v522
        %v638 = vunpack.c.l.b16 %v523
        %v639 = vunpack.c.l.b16 %v524
        %v640 = vunpack.c.l.b16 %v525
        %v641 = vunpack.c.l.b16 %v526
        %v642 = vunpack.c.l.b16 %v527
        %v643 = vunpack.c.l.b16 %v528
        %v644 = vunpack.c.l.b16 %v529
        %v645 = vunpack.c.l.b16 %v530
        %v646 = vunpack.c.l.b16 %v531
        %v647 = vpack.c.b16 %v600, %v599
        %v648 = vpack.c.b16 %v602, %v601
        %v649 = vpack.c.b16 %v604, %v603
        %v650 = vpack.c.b16 %v606, %v605
        %v651 = vpack.c.b16 %v608, %v607
        %v652 = vpack.c.b16 %v610, %v609
        %v653 = vpack.c.b16 %v612, %v611
        %v654 = vpack.c.b16 %v614, %v613
        %v655 = vpack.c.b16 %v616, %v615
        %v656 = vpack.c.b16 %v618, %v617
        %v657 = vpack.c.b16 %v620, %v619
        %v658 = vpack.c.b16 %v622, %v621
        %v659 = vpack.c.b16 %v624, %v623
        %v660 = vpack.c.b16 %v626, %v625
        %v661 = vpack.c.b16 %v628, %v627
        %v662 = vpack.c.b16 %v630, %v629
        %v663 = vpack.c.b16 %v632, %v631
        %v664 = vpack.c.b16 %v634, %v633
        %v665 = vpack.c.b16 %v636, %v635
        %v666 = vpack.c.b16 %v638, %v637
        %v667 = vpack.c.b16 %v640, %v639
        %v668 = vpack.c.b16 %v642, %v641
        %v669 = vpack.c.b16 %v644, %v643
        %v670 = vpack.c.b16 %v646, %v645
        %695 = vmatprep.subr.bf16.mxu0 0
        %696 = vmatpush1.bf16.msra.mxu0 %v647
        %697 = vmatprep.subr.bf16.mxu0 0
        %698 = vmatpush1.bf16.msra.mxu0 %v648
        %699 = vmatprep.subr.bf16.mxu0 0
        %700 = vmatpush1.bf16.msra.mxu0 %v649
        %701 = vmatprep.subr.bf16.mxu0 0
        %702 = vmatpush1.bf16.msra.mxu0 %v650
        %703 = vmatprep.subr.bf16.mxu0 0
        %704 = vmatpush1.bf16.msra.mxu0 %v651
        %705 = vmatprep.subr.bf16.mxu0 0
        %706 = vmatpush1.bf16.msra.mxu0 %v652
        %707 = vmatprep.subr.bf16.mxu0 0
        %708 = vmatpush1.bf16.msra.mxu0 %v653
        %709 = vmatprep.subr.bf16.mxu0 0
        %710 = vmatpush1.bf16.msra.mxu0 %v654
        %711 = vmatprep.subr.bf16.mxu0 0
        %712 = vmatpush1.bf16.msra.mxu0 %v655
        %713 = vmatprep.subr.bf16.mxu0 0
        %714 = vmatpush1.bf16.msra.mxu0 %v656
        %715 = vmatprep.subr.bf16.mxu0 0
        %716 = vmatpush1.bf16.msra.mxu0 %v657
        %717 = vmatprep.subr.bf16.mxu0 0
        %718 = vmatpush1.bf16.msra.mxu0 %v658
        %719 = vmatprep.subr.bf16.mxu0 0
        %720 = vmatpush1.bf16.msra.mxu0 %v659
        %721 = vmatprep.subr.bf16.mxu0 0
        %722 = vmatpush1.bf16.msra.mxu0 %v660
        %723 = vmatprep.subr.bf16.mxu0 0
        %724 = vmatpush1.bf16.msra.mxu0 %v661
        %725 = vmatprep.subr.bf16.mxu0 0
        %726 = vmatpush1.bf16.msra.mxu0 %v662
        %727 = vmatprep.mubr.bf16.mxu0 %v541
        %728 = vmatmul.mubr.bf16.gmra.mrb[0].mxu0 %v483
        %v729 = vpop.f32.mrb[0].mxu0
        %v730 = vadd.f32 %v537, %v729
        %v731 = vpop.f32.mrb[0].mxu0
        %v732 = vpop.f32.mrb[0].mxu0
        %v733 = vadd.f32 %v537, %v732
        %v734 = vpop.f32.mrb[0].mxu0
        %735 = vmatprep.mubr.bf16.mxu0 %v540
        %736 = vmatmul.mubr.bf16.gmra.mrb[0].mxu0 %v482
        %v737 = vpop.f32.mrb[0].mxu0
        %v738 = vadd.f32 %v537, %v737
        %v739 = vpop.f32.mrb[0].mxu0
        %v740 = vpop.f32.mrb[0].mxu0
        %v741 = vpop.f32.mrb[0].mxu0
        %742 = vdwg.mxu0
        %743 = vmatprep.subr.bf16.mxu0 0
        %744 = vmatpush1.bf16.msra.mxu0 %v663
        %745 = vmatprep.subr.bf16.mxu0 0
        %746 = vmatpush1.bf16.msra.mxu0 %v664
        %747 = vmatprep.subr.bf16.mxu0 0
        %748 = vmatpush1.bf16.msra.mxu0 %v665
        %749 = vmatprep.subr.bf16.mxu0 0
        %750 = vmatpush1.bf16.msra.mxu0 %v666
        %751 = vmatprep.subr.bf16.mxu0 0
        %752 = vmatpush1.bf16.msra.mxu0 %v667
        %753 = vmatprep.subr.bf16.mxu0 0
        %754 = vmatpush1.bf16.msra.mxu0 %v668
        %755 = vmatprep.subr.bf16.mxu0 0
        %756 = vmatpush1.bf16.msra.mxu0 %v669
        %757 = vmatprep.subr.bf16.mxu0 0
        %758 = vmatpush1.bf16.msra.mxu0 %v670
        %759 = vmatprep.subr.bf16.mxu0 0
        %760 = vmatpush1.bf16.msra.mxu0 0
        %761 = vmatprep.subr.bf16.mxu0 0
        %762 = vmatpush1.bf16.msra.mxu0 0
        %763 = vmatprep.subr.bf16.mxu0 0
        %764 = vmatpush1.bf16.msra.mxu0 0
        %765 = vmatprep.subr.bf16.mxu0 0
        %766 = vmatpush1.bf16.msra.mxu0 0
        %767 = vmatprep.subr.bf16.mxu0 0
        %768 = vmatpush1.bf16.msra.mxu0 0
        %769 = vmatprep.subr.bf16.mxu0 0
        %770 = vmatpush1.bf16.msra.mxu0 0
        %771 = vmatprep.subr.bf16.mxu0 0
        %772 = vmatpush1.bf16.msra.mxu0 0
        %773 = vmatprep.subr.bf16.mxu0 0
        %774 = vmatpush1.bf16.msra.mxu0 0
        %775 = vmatprep.mubr.bf16.mxu0 0
        %776 = vmatmul.mubr.bf16.gmra.mrb[0].mxu0 %v544
        %v777 = vpop.f32.mrb[0].mxu0
        %v778 = vadd.f32 %v730, %v777
        %v779 = vpop.f32.mrb[0].mxu0
        %v780 = vpop.f32.mrb[0].mxu0
        %v781 = vadd.f32 %v733, %v780
        %v782 = vpop.f32.mrb[0].mxu0
        %783 = vmatprep.mubr.bf16.mxu0 0
        %784 = vmatmul.mubr.bf16.gmra.mrb[0].mxu0 %v543
        %v785 = vpop.f32.mrb[0].mxu0
        %v786 = vadd.f32 %v738, %v785
        %v787 = vpop.f32.mrb[0].mxu0
        %v788 = vpop.f32.mrb[0].mxu0
        %v789 = vpop.f32.mrb[0].mxu0
        %790 = vdwg.mxu0
        %v791 = vmax.f32 %v778, 0.0
        %v792 = vmax.f32 %v781, 0.0
        %v793 = vmax.f32 %v786, 0.0
        %v794 = vlaneseq
        %v795 = vshrl.u32 %v794, 7
        %v796 = vadd.s32 %v795, 8
        %v797 = vadd.s32 %v795, 16
        %vm798 = vcmp.ge.s32.totalorder %v795, 8
        %vm799 = vcmp.ge.s32.totalorder %v796, 8
        %vm800 = vcmp.ge.s32.totalorder %v797, 8
        %s801 = scalar_select %p450, 1, 0
        %v802 = vstv %s801
        %vm803 = vcmp.eq.s32.totalorder %v802, 1
        %vm804 = vmor %vm803, %vm798
        %vm805 = vmor %vm803, %vm799
        %vm806 = vmor %vm803, %vm800
        %v807 = vsel %vm804, 1, 0
        %v808 = vsel %vm805, 1, 0
        %v809 = vsel %vm806, 1, 0
        %vm810 = vcmp.eq.s32.totalorder %v807, 1
        %vm811 = vcmp.eq.s32.totalorder %v808, 1
        %vm812 = vcmp.eq.s32.totalorder %v809, 1
        %v813 = vsel %vm810, %v791, 0.0
        %v814 = vsel %vm811, %v792, 0.0
        %v815 = vsel %vm812, %v793, 0.0
        %v816 = vpack.c.bf16 %v814, %v813
        %v817 = vpack.c.bf16 %v815, %v815
        %v820 = vrot.slane %v816, 1
        %v821 = vrot.slane %v817, 1
        %v822 = vsel %vm476, %v820, %v821
        %v823 = vrot.slane %v816, 2
        %v824 = vrot.slane %v817, 2
        %v825 = vsel %vm480, %v823, %v824
        %v826 = vld [vmem:[#allocation9] sm:$0xf]
        %v827 = vld [vmem:[#allocation9 + $0x4] sm:$0xf]
        %v828 = vld [vmem:[#allocation9 + $0x8] sm:$0xf]
        %v829 = vld [vmem:[#allocation9 + $0xc] sm:$0xf]
        %v830 = vld [vmem:[#allocation9 + $0x10] sm:$0xf]
        %v831 = vld [vmem:[#allocation9 + $0x14] sm:$0xf]
        %v832 = vld [vmem:[#allocation9 + $0x18] sm:$0xf]
        %v833 = vld [vmem:[#allocation9 + $0x1c] sm:$0xf]
        %v834 = vld [vmem:[#allocation9 + $0x20] sm:$0xf]
        %v835 = vld [vmem:[#allocation9 + $0x24] sm:$0xf]
        %v836 = vld [vmem:[#allocation9 + $0x28] sm:$0xf]
        %v837 = vld [vmem:[#allocation9 + $0x2c] sm:$0xf]
        %v838 = vld [vmem:[#allocation9 + $0x30] sm:$0xf]
        %v839 = vld [vmem:[#allocation9 + $0x34] sm:$0xf]
        %v840 = vld [vmem:[#allocation9 + $0x38] sm:$0xf]
        %v841 = vld [vmem:[#allocation9 + $0x3c] sm:$0xf]
        %v842 = vld [vmem:[#allocation9 + $0x40] sm:$0xf]
        %v843 = vld [vmem:[#allocation9 + $0x44] sm:$0xf]
        %v844 = vld [vmem:[#allocation9 + $0x48] sm:$0xf]
        %v845 = vld [vmem:[#allocation9 + $0x4c] sm:$0xf]
        %v846 = vld [vmem:[#allocation9 + $0x50] sm:$0xf]
        %v847 = vld [vmem:[#allocation9 + $0x54] sm:$0xf]
        %v848 = vld [vmem:[#allocation9 + $0x58] sm:$0xf]
        %v849 = vld [vmem:[#allocation9 + $0x5c] sm:$0xf]
        %v850 = vld [vmem:[#allocation9 + $0x60] sm:$0xf]
        %v851 = vld [vmem:[#allocation9 + $0x64] sm:$0xf]
        %v852 = vld [vmem:[#allocation9 + $0x68] sm:$0xf]
        %v853 = vld [vmem:[#allocation9 + $0x6c] sm:$0xf]
        %v854 = vld [vmem:[#allocation9 + $0x70] sm:$0xf]
        %v855 = vld [vmem:[#allocation9 + $0x74] sm:$0xf]
        %v856 = vld [vmem:[#allocation9 + $0x78] sm:$0xf]
        %v857 = vld [vmem:[#allocation9 + $0x7c] sm:$0xf]
        %v858 = vld [vmem:[#allocation9 + $0x80] sm:$0xf]
        %v859 = vld [vmem:[#allocation9 + $0x84] sm:$0xf]
        %v860 = vld [vmem:[#allocation9 + $0x88] sm:$0xf]
        %v861 = vld [vmem:[#allocation9 + $0x8c] sm:$0xf]
        %v862 = vld [vmem:[#allocation9 + $0x90] sm:$0xf]
        %v863 = vld [vmem:[#allocation9 + $0x94] sm:$0xf]
        %v864 = vld [vmem:[#allocation9 + $0x98] sm:$0xf]
        %v865 = vld [vmem:[#allocation9 + $0x9c] sm:$0xf]
        %v866 = vld [vmem:[#allocation9 + $0xa0] sm:$0xf]
        %v867 = vld [vmem:[#allocation9 + $0xa4] sm:$0xf]
        %v868 = vld [vmem:[#allocation9 + $0xa8] sm:$0xf]
        %v869 = vld [vmem:[#allocation9 + $0xac] sm:$0xf]
        %v870 = vld [vmem:[#allocation9 + $0xb0] sm:$0xf]
        %v871 = vld [vmem:[#allocation9 + $0xb4] sm:$0xf]
        %v872 = vld [vmem:[#allocation9 + $0xb8] sm:$0xf]
        %v873 = vld [vmem:[#allocation9 + $0xbc] sm:$0xf]
        %v874 = vld [vmem:[%s5] sm:$0x1]
        %v876 = vlaneseq
        %v877 = vshrl.u32 %v876, 7
        %v878 = vsub.s32 0, %v877
        %v879 = vrot.slane %v874, %v878
        %v881 = vrot.slane %v822, 2
        %v882 = vrot.slane %v821, 2
        %v883 = vsel %vm480, %v881, %v882
        %v884 = vrot.slane %v825, 2
        %v885 = vrot.slane %v824, 2
        %v886 = vsel %vm480, %v884, %v885
        %v938 = vunpack.c.l.b16 %v826
        %v939 = vunpack.c.l.b16 %v827
        %v940 = vunpack.c.l.b16 %v828
        %v941 = vunpack.c.l.b16 %v829
        %v942 = vunpack.c.l.b16 %v830
        %v943 = vunpack.c.l.b16 %v831
        %v944 = vunpack.c.l.b16 %v832
        %v945 = vunpack.c.l.b16 %v833
        %v946 = vunpack.c.l.b16 %v834
        %v947 = vunpack.c.l.b16 %v835
        %v948 = vunpack.c.l.b16 %v836
        %v949 = vunpack.c.l.b16 %v837
        %v950 = vunpack.c.l.b16 %v838
        %v951 = vunpack.c.l.b16 %v839
        %v952 = vunpack.c.l.b16 %v840
        %v953 = vunpack.c.l.b16 %v841
        %v954 = vunpack.c.l.b16 %v842
        %v955 = vunpack.c.l.b16 %v843
        %v956 = vunpack.c.l.b16 %v844
        %v957 = vunpack.c.l.b16 %v845
        %v958 = vunpack.c.l.b16 %v846
        %v959 = vunpack.c.l.b16 %v847
        %v960 = vunpack.c.l.b16 %v848
        %v961 = vunpack.c.l.b16 %v849
        %v962 = vunpack.c.l.b16 %v850
        %v963 = vunpack.c.l.b16 %v851
        %v964 = vunpack.c.l.b16 %v852
        %v965 = vunpack.c.l.b16 %v853
        %v966 = vunpack.c.l.b16 %v854
        %v967 = vunpack.c.l.b16 %v855
        %v968 = vunpack.c.l.b16 %v856
        %v969 = vunpack.c.l.b16 %v857
        %v970 = vunpack.c.l.b16 %v858
        %v971 = vunpack.c.l.b16 %v859
        %v972 = vunpack.c.l.b16 %v860
        %v973 = vunpack.c.l.b16 %v861
        %v974 = vunpack.c.l.b16 %v862
        %v975 = vunpack.c.l.b16 %v863
        %v976 = vunpack.c.l.b16 %v864
        %v977 = vunpack.c.l.b16 %v865
        %v978 = vunpack.c.l.b16 %v866
        %v979 = vunpack.c.l.b16 %v867
        %v980 = vunpack.c.l.b16 %v868
        %v981 = vunpack.c.l.b16 %v869
        %v982 = vunpack.c.l.b16 %v870
        %v983 = vunpack.c.l.b16 %v871
        %v984 = vunpack.c.l.b16 %v872
        %v985 = vunpack.c.l.b16 %v873
        %v986 = vpack.c.b16 %v939, %v938
        %v987 = vpack.c.b16 %v941, %v940
        %v988 = vpack.c.b16 %v943, %v942
        %v989 = vpack.c.b16 %v945, %v944
        %v990 = vpack.c.b16 %v947, %v946
        %v991 = vpack.c.b16 %v949, %v948
        %v992 = vpack.c.b16 %v951, %v950
        %v993 = vpack.c.b16 %v953, %v952
        %v994 = vpack.c.b16 %v955, %v954
        %v995 = vpack.c.b16 %v957, %v956
        %v996 = vpack.c.b16 %v959, %v958
        %v997 = vpack.c.b16 %v961, %v960
        %v998 = vpack.c.b16 %v963, %v962
        %v999 = vpack.c.b16 %v965, %v964
        %v1000 = vpack.c.b16 %v967, %v966
        %v1001 = vpack.c.b16 %v969, %v968
        %v1002 = vpack.c.b16 %v971, %v970
        %v1003 = vpack.c.b16 %v973, %v972
        %v1004 = vpack.c.b16 %v975, %v974
        %v1005 = vpack.c.b16 %v977, %v976
        %v1006 = vpack.c.b16 %v979, %v978
        %v1007 = vpack.c.b16 %v981, %v980
        %v1008 = vpack.c.b16 %v983, %v982
        %v1009 = vpack.c.b16 %v985, %v984
        %1034 = vmatprep.subr.bf16.mxu0 0
        %1035 = vmatpush1.bf16.msra.mxu0 %v986
        %1036 = vmatprep.subr.bf16.mxu0 0
        %1037 = vmatpush1.bf16.msra.mxu0 %v987
        %1038 = vmatprep.subr.bf16.mxu0 0
        %1039 = vmatpush1.bf16.msra.mxu0 %v988
        %1040 = vmatprep.subr.bf16.mxu0 0
        %1041 = vmatpush1.bf16.msra.mxu0 %v989
        %1042 = vmatprep.subr.bf16.mxu0 0
        %1043 = vmatpush1.bf16.msra.mxu0 %v990
        %1044 = vmatprep.subr.bf16.mxu0 0
        %1045 = vmatpush1.bf16.msra.mxu0 %v991
        %1046 = vmatprep.subr.bf16.mxu0 0
        %1047 = vmatpush1.bf16.msra.mxu0 %v992
        %1048 = vmatprep.subr.bf16.mxu0 0
        %1049 = vmatpush1.bf16.msra.mxu0 %v993
        %1050 = vmatprep.subr.bf16.mxu0 0
        %1051 = vmatpush1.bf16.msra.mxu0 %v994
        %1052 = vmatprep.subr.bf16.mxu0 0
        %1053 = vmatpush1.bf16.msra.mxu0 %v995
        %1054 = vmatprep.subr.bf16.mxu0 0
        %1055 = vmatpush1.bf16.msra.mxu0 %v996
        %1056 = vmatprep.subr.bf16.mxu0 0
        %1057 = vmatpush1.bf16.msra.mxu0 %v997
        %1058 = vmatprep.subr.bf16.mxu0 0
        %1059 = vmatpush1.bf16.msra.mxu0 %v998
        %1060 = vmatprep.subr.bf16.mxu0 0
        %1061 = vmatpush1.bf16.msra.mxu0 %v999
        %1062 = vmatprep.subr.bf16.mxu0 0
        %1063 = vmatpush1.bf16.msra.mxu0 %v1000
        %1064 = vmatprep.subr.bf16.mxu0 0
        %1065 = vmatpush1.bf16.msra.mxu0 %v1001
        %1066 = vmatprep.mubr.bf16.mxu0 %v883
        %1067 = vmatmul.mubr.bf16.gmra.mrb[0].mxu0 %v825
        %v1068 = vpop.f32.mrb[0].mxu0
        %v1069 = vadd.f32 %v879, %v1068
        %v1070 = vpop.f32.mrb[0].mxu0
        %v1071 = vpop.f32.mrb[0].mxu0
        %v1072 = vadd.f32 %v879, %v1071
        %v1073 = vpop.f32.mrb[0].mxu0
        %1074 = vdwg.mxu0
        %1075 = vmatprep.subr.bf16.mxu0 0
        %1076 = vmatpush1.bf16.msra.mxu0 %v1002
        %1077 = vmatprep.subr.bf16.mxu0 0
        %1078 = vmatpush1.bf16.msra.mxu0 %v1003
        %1079 = vmatprep.subr.bf16.mxu0 0
        %1080 = vmatpush1.bf16.msra.mxu0 %v1004
        %1081 = vmatprep.subr.bf16.mxu0 0
        %1082 = vmatpush1.bf16.msra.mxu0 %v1005
        %1083 = vmatprep.subr.bf16.mxu0 0
        %1084 = vmatpush1.bf16.msra.mxu0 %v1006
        %1085 = vmatprep.subr.bf16.mxu0 0
        %1086 = vmatpush1.bf16.msra.mxu0 %v1007
        %1087 = vmatprep.subr.bf16.mxu0 0
        %1088 = vmatpush1.bf16.msra.mxu0 %v1008
        %1089 = vmatprep.subr.bf16.mxu0 0
        %1090 = vmatpush1.bf16.msra.mxu0 %v1009
        %1091 = vmatprep.subr.bf16.mxu0 0
        %1092 = vmatpush1.bf16.msra.mxu0 0
        %1093 = vmatprep.subr.bf16.mxu0 0
        %1094 = vmatpush1.bf16.msra.mxu0 0
        %1095 = vmatprep.subr.bf16.mxu0 0
        %1096 = vmatpush1.bf16.msra.mxu0 0
        %1097 = vmatprep.subr.bf16.mxu0 0
        %1098 = vmatpush1.bf16.msra.mxu0 0
        %1099 = vmatprep.subr.bf16.mxu0 0
        %1100 = vmatpush1.bf16.msra.mxu0 0
        %1101 = vmatprep.subr.bf16.mxu0 0
        %1102 = vmatpush1.bf16.msra.mxu0 0
        %1103 = vmatprep.subr.bf16.mxu0 0
        %1104 = vmatpush1.bf16.msra.mxu0 0
        %1105 = vmatprep.subr.bf16.mxu0 0
        %1106 = vmatpush1.bf16.msra.mxu0 0
        %1107 = vmatprep.mubr.bf16.mxu0 0
        %1108 = vmatmul.mubr.bf16.gmra.mrb[0].mxu0 %v886
        %v1109 = vpop.f32.mrb[0].mxu0
        %v1110 = vadd.f32 %v1069, %v1109
        %v1111 = vpop.f32.mrb[0].mxu0
        %v1112 = vpop.f32.mrb[0].mxu0
        %v1113 = vadd.f32 %v1072, %v1112
        %v1114 = vpop.f32.mrb[0].mxu0
        %1115 = vdwg.mxu0
        %v1116 = vmax.f32 %v1110, 0.0
        %v1117 = vmax.f32 %v1113, 0.0
        %v1118 = vld [vmem:[%s388] sm:$0xf]
        %v1119 = vld [vmem:[%s388 + $0x4] sm:$0xf]
        %v1120 = vld [vmem:[#allocation11] sm:$0xf]
        %v1121 = vld [vmem:[#allocation11 + $0x4] sm:$0xf]
        %v1122 = vld [vmem:[#allocation11 + $0x8] sm:$0xf]
        %v1123 = vld [vmem:[#allocation11 + $0xc] sm:$0xf]
        %v1124 = vld [vmem:[#allocation11 + $0x10] sm:$0xf]
        %v1125 = vld [vmem:[#allocation11 + $0x14] sm:$0xf]
        %v1126 = vld [vmem:[#allocation11 + $0x18] sm:$0xf]
        %v1127 = vld [vmem:[#allocation11 + $0x1c] sm:$0xf]
        %v1128 = vld [vmem:[#allocation11 + $0x20] sm:$0xf]
        %v1129 = vld [vmem:[#allocation11 + $0x24] sm:$0xf]
        %v1130 = vld [vmem:[#allocation11 + $0x28] sm:$0xf]
        %v1131 = vld [vmem:[#allocation11 + $0x2c] sm:$0xf]
        %v1132 = vld [vmem:[#allocation11 + $0x30] sm:$0xf]
        %v1133 = vld [vmem:[#allocation11 + $0x34] sm:$0xf]
        %v1134 = vld [vmem:[#allocation11 + $0x38] sm:$0xf]
        %v1135 = vld [vmem:[#allocation11 + $0x3c] sm:$0xf]
        %v1136 = vld [vmem:[%s7] sm:$0x1]
        %v1138 = vlaneseq
        %v1139 = vshrl.u32 %v1138, 7
        %v1140 = vsub.s32 0, %v1139
        %v1141 = vrot.slane %v1136, %v1140
        %v1145 = vunpack.c.l.b16 %v1118
        %v1146 = vunpack.c.l.b16 %v1119
        %v1147 = vpack.c.b16 %v1146, %v1145
        %v1165 = vunpack.c.l.b16 %v1120
        %v1166 = vunpack.c.l.b16 %v1121
        %v1167 = vunpack.c.l.b16 %v1122
        %v1168 = vunpack.c.l.b16 %v1123
        %v1169 = vunpack.c.l.b16 %v1124
        %v1170 = vunpack.c.l.b16 %v1125
        %v1171 = vunpack.c.l.b16 %v1126
        %v1172 = vunpack.c.l.b16 %v1127
        %v1173 = vunpack.c.l.b16 %v1128
        %v1174 = vunpack.c.l.b16 %v1129
        %v1175 = vunpack.c.l.b16 %v1130
        %v1176 = vunpack.c.l.b16 %v1131
        %v1177 = vunpack.c.l.b16 %v1132
        %v1178 = vunpack.c.l.b16 %v1133
        %v1179 = vunpack.c.l.b16 %v1134
        %v1180 = vunpack.c.l.b16 %v1135
        %v1181 = vpack.c.b16 %v1166, %v1165
        %v1182 = vpack.c.b16 %v1168, %v1167
        %v1183 = vpack.c.b16 %v1170, %v1169
        %v1184 = vpack.c.b16 %v1172, %v1171
        %v1185 = vpack.c.b16 %v1174, %v1173
        %v1186 = vpack.c.b16 %v1176, %v1175
        %v1187 = vpack.c.b16 %v1178, %v1177
        %v1188 = vpack.c.b16 %v1180, %v1179
        %1197 = vmatprep.subr.bf16.mxu0 0
        %1198 = vmatpush1.bf16.msra.mxu0 %v1181
        %1199 = vmatprep.subr.bf16.mxu0 0
        %1200 = vmatpush1.bf16.msra.mxu0 %v1182
        %1201 = vmatprep.subr.bf16.mxu0 0
        %1202 = vmatpush1.bf16.msra.mxu0 %v1183
        %1203 = vmatprep.subr.bf16.mxu0 0
        %1204 = vmatpush1.bf16.msra.mxu0 %v1184
        %1205 = vmatprep.subr.bf16.mxu0 0
        %1206 = vmatpush1.bf16.msra.mxu0 %v1185
        %1207 = vmatprep.subr.bf16.mxu0 0
        %1208 = vmatpush1.bf16.msra.mxu0 %v1186
        %1209 = vmatprep.subr.bf16.mxu0 0
        %1210 = vmatpush1.bf16.msra.mxu0 %v1187
        %1211 = vmatprep.subr.bf16.mxu0 0
        %1212 = vmatpush1.bf16.msra.mxu0 %v1188
        %1213 = vmatprep.subr.bf16.mxu0 0
        %1214 = vmatpush1.bf16.msra.mxu0 0
        %1215 = vmatprep.subr.bf16.mxu0 0
        %1216 = vmatpush1.bf16.msra.mxu0 0
        %1217 = vmatprep.subr.bf16.mxu0 0
        %1218 = vmatpush1.bf16.msra.mxu0 0
        %1219 = vmatprep.subr.bf16.mxu0 0
        %1220 = vmatpush1.bf16.msra.mxu0 0
        %1221 = vmatprep.subr.bf16.mxu0 0
        %1222 = vmatpush1.bf16.msra.mxu0 0
        %1223 = vmatprep.subr.bf16.mxu0 0
        %1224 = vmatpush1.bf16.msra.mxu0 0
        %1225 = vmatprep.subr.bf16.mxu0 0
        %1226 = vmatpush1.bf16.msra.mxu0 0
        %1227 = vmatprep.subr.bf16.mxu0 0
        %1228 = vmatpush1.bf16.msra.mxu0 0
        %1229 = vmatprep.mubr.bf16.mxu0 0
        %1230 = vmatmul.mubr.bf16.gmra.mrb[0].mxu0 %v1147
        %v1231 = vpop.f32.mrb[0].mxu0
        %v1232 = vadd.f32 %v1141, %v1231
        %v1233 = vpop.f32.mrb[0].mxu0
        %v1234 = vpop.f32.mrb[0].mxu0
        %v1235 = vadd.f32 %v1141, %v1234
        %v1236 = vpop.f32.mrb[0].mxu0
        %1237 = vdwg.mxu0
        %v1238 = vadd.f32 %v1116, %v1232
        %v1239 = vadd.f32 %v1117, %v1235
        %v1240 = vmax.f32 %v1238, 0.0
        %v1241 = vmax.f32 %v1239, 0.0
        %1242 = vst [vmem:[%s437] sm:$0xff] %v1240
        %1243 = vst [vmem:[%s437 + $0x8] sm:$0xff] %v1241
        %s1244 = sand.u32 %s239, 1
        %s1245 = scalar_lea.sflag [#allocation5], %s1244
        %s1246 = sand.u32 %s239, 1
        %s1247 = smul.addr %s1246, 16
        %s1248 = scalar_lea.vmem [#allocation12], %s1247
        // Predicated region
        $region81: #{tpu_custom_call.1} parent=51 // pred_check
          %p1249 = pneg %p249
        $region82: #{tpu_custom_call.1} parent=51 // pred_check_branch
          %1251 = sbr.rel (%p1249) target = $region84
        $region83: #{tpu_custom_call.1} parent=51 // pred_region
          %s1252 = smul.u32 2, %s34
          %s1254 = ssub.s32 256, 256
          %1255 = vsyncadd %s1245, %s1254
          %s1256 = smul.addr %s33, 6
          %s1257 = sadd.s32 %s1252, %s1256
          %s1258 = smul.addr %s1257, 128
          %s1259 = scalar_lea.hbm %s8, %s1258
          %s1260 = sshll.u32 %s1248, 4
          %s1261 = int_to_ptr.vmem [resolvable:$true] %s1260
          %1266 = dma.vmem_to_hbm [thread:$0]  %s1261, 256, %s1259, %s1245, 128, 128, 8
        $region84: #{tpu_custom_call.1} parent=51 // pred_fallthru
          _
      $region52: #{tpu_custom_call.1} parent=5 // pred_fallthru
        _
      %p1267 = scmp.le.s32.totalorder 2, %s24
      // Predicated region
      $region85: #{tpu_custom_call.1} parent=5 // pred_check
        %p1268 = pneg %p1267
      $region86: #{tpu_custom_call.1} parent=5 // pred_check_branch
        %1270 = sbr.rel (%p1268) target = $region88
      $region87: #{tpu_custom_call.1} parent=5 // pred_region
        %s1271 = ssub.s32 %s24, 2
        // Predicated region
        $region89: #{tpu_custom_call.1} parent=87 // pred_check
          %p1272 = pneg %p255
        $region90: #{tpu_custom_call.1} parent=87 // pred_check_branch
          %1274 = sbr.rel (%p1272) target = $region92
        $region91: #{tpu_custom_call.1} parent=87 // pred_region
          %s1275 = sand.u32 %s240, 1
          %s1276 = scalar_lea.sflag [#allocation5], %s1275
          %s1277 = sand.u32 %s240, 1
          %s1278 = smul.addr %s1277, 16
          %s1279 = scalar_lea.vmem [#allocation12], %s1278
          %1280 = dma.done %s1276, 256
        $region92: #{tpu_custom_call.1} parent=87 // pred_fallthru
          _
      $region88: #{tpu_custom_call.1} parent=5 // pred_fallthru
        _
    $region6: #{tpu_custom_call.1} parent=1 // loop_footer
      %s28 = sadd.s32 1, %s24
    $region7: #{tpu_custom_call.1} parent=1 // loop_footer_branch
      %23 = sbr.rel target = $region3
    $region8: #{tpu_custom_call.1} parent=1 // loop_exit
      _
    %1281 = vsyncpa [#allocation4], 1
    %s1282 = scalar_lea.sflag [#allocation4], 1
    %1283 = vsyncpa %s1282, 1
    %1284 = vsyncpa [#allocation7], 1
    %s1285 = scalar_lea.sflag [#allocation7], 1
    %1286 = vsyncpa %s1285, 1
    %1287 = vsyncpa [#allocation10], 1
    %1288 = vsyncpa [#allocation5], 1
    %s1289 = scalar_lea.sflag [#allocation5], 1
    %1290 = vsyncpa %s1289, 1

</llo_original>
